<compile_context>
chip_gen: v6e
topology: v6e:2x2x1
jax: 0.10.0
libtpu: 0.0.40
codegen_flags: <defaults>
</compile_context>

<pallas_src>
import functools

import jax
import jax.numpy as jnp
from jax.experimental import pallas as pl
from jax.experimental.pallas import tpu as pltpu

EPS = 1e-5


def vae_unit_kernel(m_true, wT_ref, pT_ref, g_ref, beta_ref, a_ref, o_ref):
    """wT:(Cout,K) bf16, pT:(K,Mp) bf16, g/beta:(Cout,1) f32, a:(1,1) SMEM f32
       -> o:(Cout,Mp) f32 (lane-dense)."""
    # ---- Conv2d as a lane-dense MXU matmul: (Cout,K) @ (K,Mp) -> (Cout,Mp) ----
    z = jnp.dot(wT_ref[...], pT_ref[...], preferred_element_type=jnp.float32)

    # ---- BatchNorm2d (training mode), one-pass stats over the true M cols ----
    inv_m = jnp.float32(1.0 / m_true)
    s1 = jnp.sum(z, axis=1, keepdims=True)            # (Cout, 1)
    s2 = jnp.sum(z * z, axis=1, keepdims=True)        # (Cout, 1)
    mean = s1 * inv_m
    var = s2 * inv_m - mean * mean                    # biased variance
    scale = g_ref[...] * jax.lax.rsqrt(var + EPS)     # folded gamma * invstd
    shift = beta_ref[...] - mean * scale              # folded beta - mean*scale
    y = z * scale + shift                             # single multiply-add pass

    # ---- PReLU (single shared slope, scalar from SMEM) ----
    a = a_ref[0, 0]
    o_ref[...] = jnp.where(y >= 0.0, y, a * y)


def vae_unit_encoder(x_nhwc, weight_oihw, bias, gamma, beta, prelu_a):
    """x_nhwc: (N,H,W,Cin) f32; weight_oihw: (Cout,Cin,4,4). Returns NHWC output."""
    N, H, W, Cin = x_nhwc.shape
    Cout = weight_oihw.shape[0]
    KH = KW = 4
    S, P = 2, 2
    Hout = (H + 2 * P - KH) // S + 1
    Wout = (W + 2 * P - KW) // S + 1
    M = N * Hout * Wout
    K = Cin * KH * KW
    Mp = ((M + 127) // 128) * 128          # pad M up to a lane multiple

    # --- glue: host-side im2col, built directly in bf16, transposed (K, Mp) ---
    xp = jnp.pad(x_nhwc, ((0, 0), (P, P), (P, P), (0, 0)))
    slices = []
    for kh in range(KH):
        for kw in range(KW):
            slices.append(
                xp[:, kh:kh + S * (Hout - 1) + 1:S, kw:kw + S * (Wout - 1) + 1:S, :]
            )
    # (N, Hout, Wout, Cin, KH*KW) with last axis index = kh*KW + kw
    patches = jnp.stack(slices, axis=-1).reshape(M, K)   # K order (cin,kh,kw) == OIHW
    pT = jnp.zeros((K, Mp), jnp.bfloat16).at[:, :M].set(
        patches.T.astype(jnp.bfloat16))

    wT = weight_oihw.reshape(Cout, K).astype(jnp.bfloat16)   # (Cout, K), same K order
    _ = bias   # cancelled exactly by training-mode BN mean subtraction (see header)
    g2 = gamma.reshape(Cout, 1).astype(jnp.float32)
    be2 = beta.reshape(Cout, 1).astype(jnp.float32)
    a2 = prelu_a.reshape(1, 1).astype(jnp.float32)

    cost = pl.CostEstimate(
        flops=2 * Cout * K * Mp + 6 * Cout * Mp,
        transcendentals=Cout,
        bytes_accessed=pT.size * 2 + wT.size * 2 + Cout * Mp * 4 + 8 * Cout + 4,
    )

    out_t = pl.pallas_call(
        functools.partial(vae_unit_kernel, M),
        out_shape=jax.ShapeDtypeStruct((Cout, Mp), jnp.float32),
        grid=(1,),
        in_specs=[
            pl.BlockSpec((Cout, K), lambda i: (0, 0)),      # W_flat   (bf16)
            pl.BlockSpec((K, Mp), lambda i: (0, 0)),        # patches^T (bf16)
            pl.BlockSpec((Cout, 1), lambda i: (0, 0)),      # gamma
            pl.BlockSpec((Cout, 1), lambda i: (0, 0)),      # beta
            pl.BlockSpec(memory_space=pltpu.MemorySpace.SMEM),  # PReLU slope
        ],
        out_specs=pl.BlockSpec((Cout, Mp), lambda i: (0, 0)),
        compiler_params=pltpu.CompilerParams(
            dimension_semantics=("arbitrary",),
            vmem_limit_bytes=32 * 1024 * 1024,   # tiny problem; far under every gen
        ),
        cost_estimate=cost,
    )(wT, pT, g2, be2, a2)

    # (Cout, Mp) -> drop pad -> (M, Cout) -> NHWC
    return out_t[:, :M].T.reshape(N, Hout, Wout, Cout)


def reference_jax(x_nhwc, weight_oihw, bias, gamma, beta, prelu_a):
    """Pure-JAX reference (XLA conv) for correctness check."""
    z = jax.lax.conv_general_dilated(
        x_nhwc, weight_oihw, window_strides=(2, 2), padding=((2, 2), (2, 2)),
        dimension_numbers=("NHWC", "OIHW", "NHWC"))
    z = z + bias[None, None, None, :]
    mean = z.mean(axis=(0, 1, 2), keepdims=True)
    var = ((z - mean) ** 2).mean(axis=(0, 1, 2), keepdims=True)
    y = (z - mean) / jnp.sqrt(var + EPS) * gamma + beta
    return jnp.where(y >= 0, y, prelu_a * y)


if __name__ == "__main__":
    key = jax.random.PRNGKey(0)
    k_x, k_w, k_b = jax.random.split(key, 3)

    N, Cin, H, W = 2, 4, 16, 16
    Cout = 8

    # NHWC input (PyTorch NCHW [2,4,16,16] transposed to [2,16,16,4]).
    x = jax.random.normal(k_x, (N, H, W, Cin), dtype=jnp.float32)

    # Deterministic synthetic parameters (shapes from nn.Conv2d / BatchNorm2d / PReLU).
    weight = 0.1 * jax.random.normal(k_w, (Cout, Cin, 4, 4), dtype=jnp.float32)
    bias = 0.05 * jax.random.normal(k_b, (Cout,), dtype=jnp.float32)
    gamma = jnp.ones((Cout,), dtype=jnp.float32)
    beta = jnp.zeros((Cout,), dtype=jnp.float32)
    prelu_a = jnp.array(0.25, dtype=jnp.float32)

    out = vae_unit_encoder(x, weight, bias, gamma, beta, prelu_a)
    out = jax.block_until_ready(out)

    # Matched-precision reference (same bf16 rounding of the matmul inputs).
    ref_mp = reference_jax(
        x.astype(jnp.bfloat16).astype(jnp.float32),
        weight.astype(jnp.bfloat16).astype(jnp.float32),
        bias, gamma, beta, prelu_a)
    # Full-f32 reference (bf16 matmul inputs -> slightly looser tolerance).
    ref_f32 = reference_jax(x, weight, bias, gamma, beta, prelu_a)

    assert out.shape == ref_f32.shape == (N, 9, 9, Cout), (out.shape, ref_f32.shape)
    assert jnp.allclose(out, ref_mp, atol=2e-3, rtol=2e-3), \
        float(jnp.max(jnp.abs(out - ref_mp)))
    assert jnp.allclose(out, ref_f32, atol=5e-2, rtol=5e-2), \
        float(jnp.max(jnp.abs(out - ref_f32)))

    print("KERNEL_OK")
</pallas_src>

<mosaic_0001>
module attributes {stable_mosaic.version = 11 : i64} {
  func.func @vae_unit_kernel(%arg0: i32, %arg1: memref<8x64xbf16, #tpu.memory_space<vmem>>, %arg2: memref<64x256xbf16, #tpu.memory_space<vmem>>, %arg3: memref<8x1xf32, #tpu.memory_space<vmem>>, %arg4: memref<8x1xf32, #tpu.memory_space<vmem>>, %arg5: memref<1x1xf32, #tpu.memory_space<smem>>, %arg6: memref<8x256xf32, #tpu.memory_space<vmem>>) attributes {dimension_semantics = [#tpu.dimension_semantics<arbitrary>], iteration_bounds = array<i64: 1>, scalar_prefetch = 0 : i64, scratch_operands = 0 : i64, tpu.core_type = #tpu.core_type<tc>, window_params = [{pipeline_mode = #tpu.pipeline_mode<synchronous>, transform_indices = @transform_0, window_bounds = array<i64: 8, 64>}, {pipeline_mode = #tpu.pipeline_mode<synchronous>, transform_indices = @transform_1, window_bounds = array<i64: 64, 256>}, {pipeline_mode = #tpu.pipeline_mode<synchronous>, transform_indices = @transform_2, window_bounds = array<i64: 8, 1>}, {pipeline_mode = #tpu.pipeline_mode<synchronous>, transform_indices = @transform_3, window_bounds = array<i64: 8, 1>}, {transform_indices = @transform_4, window_bounds = array<i64: 1, 1>}, {pipeline_mode = #tpu.pipeline_mode<synchronous>, transform_indices = @transform_5, window_bounds = array<i64: 8, 256>}]} {
    %c0 = arith.constant 0 : index
    %c0_0 = arith.constant 0 : index
    %0 = vector.load %arg1[%c0, %c0_0] : memref<8x64xbf16, #tpu.memory_space<vmem>>, vector<8x64xbf16>
    %c0_1 = arith.constant 0 : index
    %c0_2 = arith.constant 0 : index
    %1 = vector.load %arg2[%c0_1, %c0_2] : memref<64x256xbf16, #tpu.memory_space<vmem>>, vector<64x256xbf16>
    %cst = arith.constant dense<0.000000e+00> : vector<8x256xf32>
    %2 = tpu.matmul %0, %1, %cst {dimension_numbers = #tpu.dot_dimension_numbers<[1], [0], [0], [1], [0, 0, 1, 1], [], []>} : vector<8x64xbf16>, vector<64x256xbf16>, vector<8x256xf32> -> vector<8x256xf32>
    %cst_3 = arith.constant dense<0.000000e+00> : vector<8xf32>
    %3 = vector.multi_reduction <add>, %2, %cst_3 [1] : vector<8x256xf32> to vector<8xf32>
    %4 = vector.shape_cast %3 : vector<8xf32> to vector<8x1xf32>
    %5 = arith.mulf %2, %2 : vector<8x256xf32>
    %cst_4 = arith.constant dense<0.000000e+00> : vector<8xf32>
    %6 = vector.multi_reduction <add>, %5, %cst_4 [1] : vector<8x256xf32> to vector<8xf32>
    %7 = vector.shape_cast %6 : vector<8xf32> to vector<8x1xf32>
    %cst_5 = arith.constant 0.00617283955 : f32
    %8 = vector.broadcast %cst_5 : f32 to vector<8x1xf32>
    %9 = arith.mulf %4, %8 : vector<8x1xf32>
    %cst_6 = arith.constant 0.00617283955 : f32
    %10 = vector.broadcast %cst_6 : f32 to vector<8x1xf32>
    %11 = arith.mulf %7, %10 : vector<8x1xf32>
    %12 = arith.mulf %9, %9 : vector<8x1xf32>
    %13 = arith.subf %11, %12 : vector<8x1xf32>
    %c0_7 = arith.constant 0 : index
    %c0_8 = arith.constant 0 : index
    %14 = vector.load %arg3[%c0_7, %c0_8] : memref<8x1xf32, #tpu.memory_space<vmem>>, vector<8x1xf32>
    %cst_9 = arith.constant 9.99999974E-6 : f32
    %15 = vector.broadcast %cst_9 : f32 to vector<8x1xf32>
    %16 = arith.addf %13, %15 : vector<8x1xf32>
    %17 = math.rsqrt %16 : vector<8x1xf32>
    %18 = arith.mulf %14, %17 : vector<8x1xf32>
    %c0_10 = arith.constant 0 : index
    %c0_11 = arith.constant 0 : index
    %19 = vector.load %arg4[%c0_10, %c0_11] : memref<8x1xf32, #tpu.memory_space<vmem>>, vector<8x1xf32>
    %20 = arith.mulf %9, %18 : vector<8x1xf32>
    %21 = arith.subf %19, %20 : vector<8x1xf32>
    %22 = vector.broadcast %18 : vector<8x1xf32> to vector<8x256xf32>
    %23 = arith.mulf %2, %22 : vector<8x256xf32>
    %24 = vector.broadcast %21 : vector<8x1xf32> to vector<8x256xf32>
    %25 = arith.addf %23, %24 : vector<8x256xf32>
    %c0_12 = arith.constant 0 : index
    %c0_13 = arith.constant 0 : index
    %26 = memref.load %arg5[%c0_12, %c0_13] : memref<1x1xf32, #tpu.memory_space<smem>>
    %cst_14 = arith.constant 0.000000e+00 : f32
    %27 = vector.broadcast %cst_14 : f32 to vector<8x256xf32>
    %28 = arith.cmpf oge, %25, %27 : vector<8x256xf32>
    %29 = vector.broadcast %26 : f32 to vector<8x256xf32>
    %30 = arith.mulf %29, %25 : vector<8x256xf32>
    %31 = arith.select %28, %25, %30 : vector<8x256xi1>, vector<8x256xf32>
    %c0_15 = arith.constant 0 : index
    %c0_16 = arith.constant 0 : index
    %32 = vector.load %arg6[%c0_15, %c0_16] : memref<8x256xf32, #tpu.memory_space<vmem>>, vector<8x256xf32>
    tpu.vector_store %arg6[%c0_15, %c0_16], %31 {strides = array<i32>} : memref<8x256xf32, #tpu.memory_space<vmem>>, vector<8x256xf32>,
    return
  }
  func.func @transform_0(%arg0: i32) -> (i32, i32) {
    %c0_i32 = arith.constant 0 : i32
    %c0_i32_0 = arith.constant 0 : i32
    %c0_i32_1 = arith.constant 0 : i32
    return %c0_i32, %c0_i32_0 : i32, i32
  }
  func.func @transform_1(%arg0: i32) -> (i32, i32) {
    %c0_i32 = arith.constant 0 : i32
    %c0_i32_0 = arith.constant 0 : i32
    %c0_i32_1 = arith.constant 0 : i32
    return %c0_i32, %c0_i32_0 : i32, i32
  }
  func.func @transform_2(%arg0: i32) -> (i32, i32) {
    %c0_i32 = arith.constant 0 : i32
    %c0_i32_0 = arith.constant 0 : i32
    %c0_i32_1 = arith.constant 0 : i32
    return %c0_i32, %c0_i32_0 : i32, i32
  }
  func.func @transform_3(%arg0: i32) -> (i32, i32) {
    %c0_i32 = arith.constant 0 : i32
    %c0_i32_0 = arith.constant 0 : i32
    %c0_i32_1 = arith.constant 0 : i32
    return %c0_i32, %c0_i32_0 : i32, i32
  }
  func.func @transform_4(%arg0: i32) -> (i32, i32) {
    %c0_i32 = arith.constant 0 : i32
    %c0_i32_0 = arith.constant 0 : i32
    %c0_i32_1 = arith.constant 0 : i32
    return %c0_i32, %c0_i32_0 : i32, i32
  }
  func.func @transform_5(%arg0: i32) -> (i32, i32) {
    %c0_i32 = arith.constant 0 : i32
    %c0_i32_0 = arith.constant 0 : i32
    %c0_i32_1 = arith.constant 0 : i32
    return %c0_i32, %c0_i32_0 : i32, i32
  }
}

</mosaic_0001>

<llo_original>
// kernel: tpu_custom_call.1
$region0: #{tpu_custom_call.1}
  #allocation0 [shape = 'u32[]', space=smem, size = 0x4, offset = 0x4, fixed_abs, tag = 'smem constant byte address 0x4 - core index']
  #allocation1 [shape = 'u32[144,128]{1,0:T(1,128)}', space=vmem, size = 0x12000, scoped, tag = 'internal scratch']
  #allocation2 [shape = 'f32[1,1]{1,0:T(1,128)S(6)}', space=smem, size = 0x200, scoped, tag = 'scoped memory for tpu_custom_call.1']
  %s0 = inlined_call_operand.vmem [shape: bf16[8,64], index: 0, kind: input, shape index: {}]
  %s1 = inlined_call_operand.hbm [shape: bf16[64,256], index: 1, kind: input, shape index: {}]
  %s2 = inlined_call_operand.vmem [shape: f32[8,1], index: 2, kind: input, shape index: {}]
  %s3 = inlined_call_operand.vmem [shape: f32[8,1], index: 3, kind: input, shape index: {}]
  %s4 = inlined_call_operand.<no memory space> [shape: f32[1,1], index: 4, kind: input, shape index: {}]
  %s5 = inlined_call_operand.hbm [shape: f32[8,256], index: 5, kind: output, shape index: {}]
  %s6 = sld [smem:[#allocation0]]
  $region34: #{tpu_custom_call.1} parent=0
    _
  %s8 = ssub.s32 1, %s6
  %s9 = scalar_select 0, %s8, %s6
  %10 = sst [smem:[#allocation2]] %s4
  $region1: #{tpu_custom_call.1} parent=0
    #allocation3 [shape = 'u8[32768]{0}', space=vmem, size = 0x8000, scoped, tag = 'input window, operand 1, single buffered']
    #allocation4 [shape = 's32[1]{0}', space=sflag, size = 0x4, scoped, tag = 'scoped memory for tpu_custom_call.1']
    #allocation5 [shape = 's32[1]{0}', space=sflag, size = 0x4, scoped, tag = 'scoped memory for tpu_custom_call.1']
    #allocation6 [shape = 'u8[8192]{0}', space=vmem, size = 0x2000, scoped, tag = 'output window, operand 0, single buffered']
    %11 = vsyncpa [#allocation4], 0
    %12 = vsyncpa [#allocation5], 0
    // Predicated region
    $region2: #{tpu_custom_call.1} parent=1 // pred_check
      _
    $region3: #{tpu_custom_call.1} parent=1 // pred_check_branch
      %14 = sbr.rel (0) target = $region5
    $region4: #{tpu_custom_call.1} parent=1 // pred_region
      _
    $region5: #{tpu_custom_call.1} parent=1 // pred_fallthru
      _
    // Predicated region
    $region6: #{tpu_custom_call.1} parent=1 // pred_check
      _
    $region7: #{tpu_custom_call.1} parent=1 // pred_check_branch
      %16 = sbr.rel (0) target = $region9
    $region8: #{tpu_custom_call.1} parent=1 // pred_region
      %s18 = ssub.s32 1024, 1024
      %19 = vsyncadd [#allocation4], %s18
      %s20 = sshll.u32 [#allocation3], 4
      %s21 = int_to_ptr.vmem [resolvable:$true] %s20
      %26 = dma.hbm_to_vmem [thread:$0]  %s1, 1024, %s21, [#allocation4], 128, 128, 8
    $region9: #{tpu_custom_call.1} parent=1 // pred_fallthru
      _
    // Predicated region
    $region10: #{tpu_custom_call.1} parent=1 // pred_check
      _
    $region11: #{tpu_custom_call.1} parent=1 // pred_check_branch
      %28 = sbr.rel (0) target = $region13
    $region12: #{tpu_custom_call.1} parent=1 // pred_region
      _
    $region13: #{tpu_custom_call.1} parent=1 // pred_fallthru
      _
    // Predicated region
    $region14: #{tpu_custom_call.1} parent=1 // pred_check
      _
    $region15: #{tpu_custom_call.1} parent=1 // pred_check_branch
      %30 = sbr.rel (0) target = $region17
    $region16: #{tpu_custom_call.1} parent=1 // pred_region
      _
    $region17: #{tpu_custom_call.1} parent=1 // pred_fallthru
      _
    // Predicated region
    $region18: #{tpu_custom_call.1} parent=1 // pred_check
      _
    $region19: #{tpu_custom_call.1} parent=1 // pred_check_branch
      %32 = sbr.rel (0) target = $region21
    $region20: #{tpu_custom_call.1} parent=1 // pred_region
      _
    $region21: #{tpu_custom_call.1} parent=1 // pred_fallthru
      _
    // Predicated region
    $region22: #{tpu_custom_call.1} parent=1 // pred_check
      _
    $region23: #{tpu_custom_call.1} parent=1 // pred_check_branch
      %34 = sbr.rel (0) target = $region25
    $region24: #{tpu_custom_call.1} parent=1 // pred_region
      %35 = dma.done [#allocation4], 1024
    $region25: #{tpu_custom_call.1} parent=1 // pred_fallthru
      _
    %v37 = vld [vmem:[%s0] sm:$0xf]
    %v38 = vld [vmem:[#allocation3] sm:$0xff]
    %v39 = vld [vmem:[#allocation3 + $0x8] sm:$0xff]
    %v40 = vld [vmem:[#allocation3 + $0x10] sm:$0xff]
    %v41 = vld [vmem:[#allocation3 + $0x18] sm:$0xff]
    %v42 = vld [vmem:[#allocation3 + $0x20] sm:$0xff]
    %v43 = vld [vmem:[#allocation3 + $0x28] sm:$0xff]
    %v44 = vld [vmem:[#allocation3 + $0x30] sm:$0xff]
    %v45 = vld [vmem:[#allocation3 + $0x38] sm:$0xff]
    %v54 = vunpack.c.l.b16 %v38
    %v55 = vunpack.c.h.b16 %v38
    %v56 = vunpack.c.l.b16 %v39
    %v57 = vunpack.c.h.b16 %v39
    %v58 = vunpack.c.l.b16 %v40
    %v59 = vunpack.c.h.b16 %v40
    %v60 = vunpack.c.l.b16 %v41
    %v61 = vunpack.c.h.b16 %v41
    %v62 = vunpack.c.l.b16 %v42
    %v63 = vunpack.c.h.b16 %v42
    %v64 = vunpack.c.l.b16 %v43
    %v65 = vunpack.c.h.b16 %v43
    %v66 = vunpack.c.l.b16 %v44
    %v67 = vunpack.c.h.b16 %v44
    %v68 = vunpack.c.l.b16 %v45
    %v69 = vunpack.c.h.b16 %v45
    %v70 = vpack.c.b16 %v56, %v54
    %v71 = vpack.c.b16 %v57, %v55
    %v72 = vpack.c.b16 %v60, %v58
    %v73 = vpack.c.b16 %v61, %v59
    %v74 = vpack.c.b16 %v64, %v62
    %v75 = vpack.c.b16 %v65, %v63
    %v76 = vpack.c.b16 %v68, %v66
    %v77 = vpack.c.b16 %v69, %v67
    %vm86 = vcmask 523264
    %v88 = vsel %vm86, %v37, 0
    %90 = vmatprep.subr.bf16.mxu0 0
    %91 = vmatpush1.bf16.msra.mxu0 0
    %92 = vmatprep.subr.bf16.mxu0 0
    %93 = vmatpush1.bf16.msra.mxu0 0
    %94 = vmatprep.subr.bf16.mxu0 0
    %95 = vmatpush1.bf16.msra.mxu0 0
    %96 = vmatprep.subr.bf16.mxu0 0
    %97 = vmatpush1.bf16.msra.mxu0 0
    %98 = vmatprep.subr.bf16.mxu0 %v77
    %99 = vmatpush1.bf16.msra.mxu0 %v76
    %100 = vmatprep.subr.bf16.mxu0 %v75
    %101 = vmatpush1.bf16.msra.mxu0 %v74
    %102 = vmatprep.subr.bf16.mxu0 %v73
    %103 = vmatpush1.bf16.msra.mxu0 %v72
    %104 = vmatprep.subr.bf16.mxu0 %v71
    %105 = vmatpush1.bf16.msra.mxu0 %v70
    %106 = vmatprep.subr.bf16.mxu0 0
    %107 = vmatpush2.bf16.msra.mxu0 0
    %108 = vmatprep.subr.bf16.mxu0 0
    %109 = vmatpush2.bf16.msra.mxu0 0
    %110 = vmatprep.subr.bf16.mxu0 0
    %111 = vmatpush2.bf16.msra.mxu0 0
    %112 = vmatprep.subr.bf16.mxu0 0
    %113 = vmatpush2.bf16.msra.mxu0 0
    %114 = vmatprep.subr.bf16.mxu0 0
    %115 = vmatpush2.bf16.msra.mxu0 0
    %116 = vmatprep.subr.bf16.mxu0 0
    %117 = vmatpush2.bf16.msra.mxu0 0
    %118 = vmatprep.subr.bf16.mxu0 0
    %119 = vmatpush2.bf16.msra.mxu0 0
    %120 = vmatprep.subr.bf16.mxu0 0
    %121 = vmatpush2.bf16.msra.mxu0 0
    %122 = vmatprep.mubr.bf16.mxu0 0
    %123 = vmatmul.mubr.bf16.gmra.mxu0 %v88
    %v124 = vpop.f32.mrf.mxu0
    %v125 = vadd.f32 0.0, %v124
    %v126 = vpop.f32.mrf.mxu0
    %v127 = vadd.f32 0.0, %v126
    %v128 = vpop.f32.mrf.mxu0
    %v129 = vpop.f32.mrf.mxu0
    %130 = vdwg.mxu0
    %v131 = vadd.f32 %v125, %v127
    %132 = vadd.xlane.f32.xlu0 %v131
    %v133 = vpop.xlane.xlu0 %132
    %v134 = vmul.f32 %v125, %v125
    %v135 = vmul.f32 %v127, %v127
    %v136 = vadd.f32 %v134, %v135
    %137 = vadd.xlane.f32.xlu0 %v136
    %v138 = vpop.xlane.xlu0 %137
    %v139 = vmul.f32 %v133, 0.0061728396
    %v140 = vmul.f32 %v138, 0.0061728396
    %v141 = vmul.f32 %v139, %v139
    %v142 = vsub.f32 %v140, %v141
    %v143 = vld [vmem:[%s2] sm:$0xff]
    %v144 = vadd.f32 %v142, 1e-05
    %v145 = vrsqrt.pop %v144
    %v146 = vmul.f32 %v143, %v145
    %v147 = vld [vmem:[%s3] sm:$0xff]
    %v148 = vmul.f32 %v139, %v146
    %v149 = vsub.f32 %v147, %v148
    %151 = vset.pattern.permute.xlu0 0
    %152 = vperm.xlu0 %151, %v146
    %v153 = vpop.permute.xlu0 %152
    %v155 = vmul.f32 %v125, %v153
    %v156 = vmul.f32 %v127, %v153
    %158 = vset.pattern.permute.xlu0 0
    %159 = vperm.xlu0 %158, %v149
    %v160 = vpop.permute.xlu0 %159
    %v162 = vadd.f32 %v155, %v160
    %v163 = vadd.f32 %v156, %v160
    %s164 = sld [smem:[#allocation2]]
    %vm165 = vcmp.ge.f32.partialorder %v162, 0.0
    %vm166 = vcmp.ge.f32.partialorder %v163, 0.0
    %v167 = vstv %s164
    %v168 = vmul.f32 %v167, %v162
    %v169 = vmul.f32 %v167, %v163
    %v170 = vsel %vm165, %v162, %v168
    %v171 = vsel %vm166, %v163, %v169
    %172 = vst [vmem:[#allocation6] sm:$0xff] %v170
    %173 = vst [vmem:[#allocation6 + $0x8] sm:$0xff] %v171
    // Predicated region
    $region26: #{tpu_custom_call.1} parent=1 // pred_check
      _
    $region27: #{tpu_custom_call.1} parent=1 // pred_check_branch
      %175 = sbr.rel (0) target = $region29
    $region28: #{tpu_custom_call.1} parent=1 // pred_region
      %s177 = ssub.s32 256, 256
      %178 = vsyncadd [#allocation5], %s177
      %s180 = sshll.u32 [#allocation6], 4
      %s181 = int_to_ptr.vmem [resolvable:$true] %s180
      %183 = dma.vmem_to_hbm [thread:$0]  %s181, 256, %s5, [#allocation5]
    $region29: #{tpu_custom_call.1} parent=1 // pred_fallthru
      _
    // Predicated region
    $region30: #{tpu_custom_call.1} parent=1 // pred_check
      _
    $region31: #{tpu_custom_call.1} parent=1 // pred_check_branch
      %185 = sbr.rel (0) target = $region33
    $region32: #{tpu_custom_call.1} parent=1 // pred_region
      %186 = dma.done [#allocation5], 256
    $region33: #{tpu_custom_call.1} parent=1 // pred_fallthru
      _
    %187 = vsyncpa [#allocation4], 1
    %188 = vsyncpa [#allocation5], 1

</llo_original>
